<compile_context>
chip_gen: v7x
topology: tpu7x:2x2x1
jax: 0.10.0
libtpu: 0.0.40
codegen_flags: <defaults>
</compile_context>

<pallas_src>
import functools

import jax
import jax.numpy as jnp
from jax.experimental import pallas as pl
from jax.experimental.pallas import tpu as pltpu


# ----------------------------------------------------------------------------
# Pallas kernel: weights = 1 - dists * inv_rr, alpha compositing over K.
# All arrays are pixel-lane-major:
#   idx_ref   : (K, T)    int32 packed point indices (-1 = empty fragment)
#   dists_ref : (K, T)    f32 squared distances
#   feats_ref : (K, C, T) bf16 pre-gathered per-fragment features
#   out_ref   : (C, T)    f32 composited image tile
# The kernel walks T in `chunk`-lane sub-slices so vreg pressure is
# independent of the (large) DMA tile.
# ----------------------------------------------------------------------------
def _make_composite_kernel(inv_rr, K, C, tile, chunk):
    assert tile % chunk == 0 and chunk % 128 == 0
    n_chunks = tile // chunk

    def kernel(idx_ref, dists_ref, feats_ref, out_ref):
        @pl.loop(0, n_chunks)
        def _(j):
            j0 = pl.multiple_of(j * chunk, chunk)
            acc = jnp.zeros((C, chunk), jnp.float32)
            transmit = jnp.ones((1, chunk), jnp.float32)
            for k in range(K):                       # K small & static -> unrolled
                idx_k = idx_ref[k:k + 1, pl.ds(j0, chunk)]      # (1, chunk) i32
                d2_k = dists_ref[k:k + 1, pl.ds(j0, chunk)]     # (1, chunk) f32
                wk = 1.0 - d2_k * inv_rr             # multiply, not divide
                wk = jnp.where(idx_k >= 0, wk, 0.0)  # empty fragments -> 0
                a_k = transmit * wk                  # alpha-composited weight
                f_k = feats_ref[k, :, pl.ds(j0, chunk)].astype(jnp.float32)
                acc = acc + a_k * f_k                # (C, chunk) FMA, f32
                transmit = transmit * (1.0 - wk)
            out_ref[:, pl.ds(j0, chunk)] = acc

    return kernel


def composite_pallas(idx, dists, features, radius, *, tile=4096, chunk=512):
    """idx, dists: (N,H,W,K); features: (P_packed, C); returns (N,H,W,C)."""
    N, H, W, K = idx.shape
    P, C = features.shape
    npix = N * H * W

    idx_flat = idx.reshape(npix, K).astype(jnp.int32)
    dists_flat = dists.reshape(npix, K).astype(jnp.float32)

    # Pre-gather per-fragment features in XLA (kernel cost independent of P).
    # Downcast to bf16 *inside* the gather so the subsequent transpose and the
    # kernel's dominant HBM stream move half the bytes.
    # TODO(synk): an in-kernel row gather from a (P,C) VMEM table does not
    # lower to a general Mosaic gather for arbitrary P, so it stays in XLA.
    idx_c = jnp.where(idx_flat >= 0, idx_flat, 0)
    feats_g = jnp.take(features.astype(jnp.bfloat16), idx_c, axis=0)  # (npix,K,C)

    # Lane-major: pixel axis last.
    idx_t = idx_flat.T                     # (K, npix)   i32
    dists_t = dists_flat.T                 # (K, npix)   f32
    feats_t = feats_g.transpose(1, 2, 0)   # (K, C, npix) bf16

    # Effective tile: multiple of `chunk`, shrunk for small inputs so padding
    # (and wasted work) stays bounded while keeping lane-dense stores.
    chunk = max(128, (chunk // 128) * 128)
    npix_chunks = -(-npix // chunk) * chunk
    tile_eff = max(chunk, min((tile // chunk) * chunk, npix_chunks))

    npix_pad = -(-npix // tile_eff) * tile_eff
    pad = npix_pad - npix
    if pad:
        # Padded fragments are marked empty (idx = -1) so they composite to 0.
        idx_t = jnp.pad(idx_t, ((0, 0), (0, pad)), constant_values=-1)
        dists_t = jnp.pad(dists_t, ((0, 0), (0, pad)))
        feats_t = jnp.pad(feats_t, ((0, 0), (0, 0), (0, pad)))

    # TODO(synk): per-point tensor radius branch (r.shape[-1] > 1) not
    # implemented; scalar radius (the common raster_settings case) is used,
    # closed over as a compile-time constant (no SMEM operand).
    inv_rr = float(1.0 / (radius * radius))

    grid = (npix_pad // tile_eff,)
    # idx + dists f32, feats bf16, out f32 per pixel; cap well under v7x VMEM.
    block_bytes = tile_eff * (4 * K + 4 * K + 2 * K * C + 4 * C)
    vmem_limit = int(min(max(4 * block_bytes, 8 << 20), 48 << 20))

    kernel = _make_composite_kernel(inv_rr, K, C, tile_eff, chunk)

    # TODO(synk): if exposed DMA is still visible in a trace after the larger
    # tile, add pipeline_mode=pl.Buffered(3) on the feats BlockSpec.
    out = pl.pallas_call(
        kernel,
        out_shape=jax.ShapeDtypeStruct((C, npix_pad), jnp.float32),
        grid=grid,
        in_specs=[
            pl.BlockSpec((K, tile_eff), lambda i: (0, i)),           # idx
            pl.BlockSpec((K, tile_eff), lambda i: (0, i)),           # dists
            pl.BlockSpec((K, C, tile_eff), lambda i: (0, 0, i)),     # feats (bf16)
        ],
        out_specs=pl.BlockSpec((C, tile_eff), lambda i: (0, i)),     # lane-dense out
        compiler_params=pltpu.CompilerParams(
            dimension_semantics=("parallel",),
            vmem_limit_bytes=vmem_limit,
        ),
    )(idx_t, dists_t, feats_t)

    # (C, npix) -> (N, H, W, C): identical to images.permute(0, 2, 3, 1).
    return out[:, :npix].T.reshape(N, H, W, C)


# ----------------------------------------------------------------------------
# Plain-JAX glue: brute-force point rasterizer (the pytorch3d PointsRasterizer
# is an external CUDA op; here: top-K nearest projected points per pixel
# inside the radius, packed indices across the batch, -1 for empty).
# ----------------------------------------------------------------------------
def rasterize_points(points_ndc, image_size, radius, K):
    # TODO(synk): pytorch3d orders fragments by z-depth with bin rasterization;
    # this synthetic rasterizer orders by 2D distance (external to the module).
    N, P, _ = points_ndc.shape
    H = W = image_size
    ys = (jnp.arange(H, dtype=jnp.float32) + 0.5) / H * 2.0 - 1.0
    xs = (jnp.arange(W, dtype=jnp.float32) + 0.5) / W * 2.0 - 1.0
    py, px = jnp.meshgrid(ys, xs, indexing="ij")
    pix = jnp.stack([px, py], axis=-1).reshape(-1, 2)           # (H*W, 2)

    def per_cloud(n):
        pts = points_ndc[n, :, :2]                              # (P, 2)
        d2 = jnp.sum((pix[:, None, :] - pts[None, :, :]) ** 2, axis=-1)  # (HW, P)
        within = d2 < radius * radius
        d2m = jnp.where(within, d2, jnp.inf)
        neg_vals, idxs = jax.lax.top_k(-d2m, K)
        vals = -neg_vals
        valid = jnp.isfinite(vals)
        idx = jnp.where(valid, idxs + n * P, -1)                # packed indices
        dists = jnp.where(valid, vals, 0.0)
        return idx.reshape(H, W, K), dists.reshape(H, W, K)

    idx, dists = jax.vmap(per_cloud)(jnp.arange(N))
    return idx.astype(jnp.int32), dists.astype(jnp.float32)


# ----------------------------------------------------------------------------
# PointsRenderer.forward equivalent.
# ----------------------------------------------------------------------------
def points_renderer_forward(points_ndc, features_packed, radius, image_size, K):
    idx, dists = rasterize_points(points_ndc, image_size, radius, K)
    images = composite_pallas(idx, dists, features_packed, radius)
    return images


# ----------------------------------------------------------------------------
# Plain-JAX reference for correctness checking.
# TODO(synk): AlphaCompositor's optional background_color path is not
# implemented (all-empty pixels return 0), matching the default compositor.
# ----------------------------------------------------------------------------
def reference_forward(points_ndc, features_packed, radius, image_size, K):
    idx, dists = rasterize_points(points_ndc, image_size, radius, K)
    w = 1.0 - dists / (radius * radius)
    valid = idx >= 0
    w = jnp.where(valid, w, 0.0)
    idx_c = jnp.where(valid, idx, 0)
    gathered = features_packed[idx_c]                            # (N,H,W,K,C)
    transmit = jnp.cumprod(1.0 - w, axis=-1)
    transmit = jnp.concatenate(
        [jnp.ones_like(w[..., :1]), transmit[..., :-1]], axis=-1)
    contrib = (transmit * w)[..., None] * gathered
    return contrib.sum(axis=-2)                                  # (N,H,W,C)


if __name__ == "__main__":
    key = jax.random.PRNGKey(0)
    k_pts, k_feat = jax.random.split(key)

    N, P_per_cloud, C = 2, 128, 8
    H = W = 20           # npix = 800 -> tile shrinks to 1024, exercises tail mask
    K = 8
    radius = 0.3

    points = jax.random.uniform(k_pts, (N, P_per_cloud, 3),
                                minval=-1.0, maxval=1.0, dtype=jnp.float32)
    features_packed = jax.random.normal(
        k_feat, (N * P_per_cloud, C), dtype=jnp.float32)

    images = points_renderer_forward(points, features_packed, radius, H, K)
    images = jax.block_until_ready(images)
    assert images.shape == (N, H, W, C)

    # The kernel streams the gathered features in bf16 (perf optimization):
    # check tightly against a reference with identical quantization, and
    # loosely against the pure-f32 reference.
    ref_bf16 = reference_forward(
        points, features_packed.astype(jnp.bfloat16).astype(jnp.float32),
        radius, H, K)
    ref_f32 = reference_forward(points, features_packed, radius, H, K)
    assert jnp.allclose(images, ref_bf16, atol=1e-3, rtol=1e-3)
    assert jnp.allclose(images, ref_f32, atol=3e-2, rtol=3e-2)

    print("KERNEL_OK")
</pallas_src>

<mosaic_0001>
module attributes {stable_mosaic.version = 11 : i64} {
  func.func @kernel(%arg0: i32, %arg1: memref<8x1024xi32, #tpu.memory_space<vmem>>, %arg2: memref<8x1024xf32, #tpu.memory_space<vmem>>, %arg3: memref<8x8x1024xbf16, #tpu.memory_space<vmem>>, %arg4: memref<8x1024xf32, #tpu.memory_space<vmem>>) attributes {dimension_semantics = [#tpu.dimension_semantics<parallel>], iteration_bounds = array<i64: 1>, scalar_prefetch = 0 : i64, scratch_operands = 0 : i64, tpu.core_type = #tpu.core_type<tc>, window_params = [{transform_indices = @transform_0, window_bounds = array<i64: 8, 1024>}, {transform_indices = @transform_1, window_bounds = array<i64: 8, 1024>}, {transform_indices = @transform_2, window_bounds = array<i64: 8, 8, 1024>}, {transform_indices = @transform_3, window_bounds = array<i64: 8, 1024>}]} {
    %c0_i32 = arith.constant 0 : i32
    %c2_i32 = arith.constant 2 : i32
    %0 = arith.addi %c0_i32, %c2_i32 : i32
    %c1_i32 = arith.constant 1 : i32
    scf.for %arg5 = %c0_i32 to %0 step %c1_i32  : i32 {
      %c1_i32_1 = arith.constant 1 : i32
      %1 = arith.muli %arg5, %c1_i32_1 : i32
      %c0_i32_2 = arith.constant 0 : i32
      %2 = arith.addi %c0_i32_2, %1 : i32
      %c512_i32 = arith.constant 512 : i32
      %3 = arith.muli %2, %c512_i32 : i32
      %4 = tpu.assume_multiple %3, 512 : i32
      %cst = arith.constant 0.000000e+00 : f32
      %5 = vector.broadcast %cst : f32 to vector<8x512xf32>
      %cst_3 = arith.constant 1.000000e+00 : f32
      %6 = vector.broadcast %cst_3 : f32 to vector<1x512xf32>
      %c0 = arith.constant 0 : index
      %7 = arith.index_cast %4 : i32 to index
      %8 = vector.load %arg1[%c0, %7] : memref<8x1024xi32, #tpu.memory_space<vmem>>, vector<1x512xi32>
      %c0_4 = arith.constant 0 : index
      %9 = arith.index_cast %4 : i32 to index
      %10 = vector.load %arg2[%c0_4, %9] : memref<8x1024xf32, #tpu.memory_space<vmem>>, vector<1x512xf32>
      %cst_5 = arith.constant 11.1111107 : f32
      %11 = vector.broadcast %cst_5 : f32 to vector<1x512xf32>
      %12 = arith.mulf %10, %11 : vector<1x512xf32>
      %cst_6 = arith.constant 1.000000e+00 : f32
      %13 = vector.broadcast %cst_6 : f32 to vector<1x512xf32>
      %14 = arith.subf %13, %12 : vector<1x512xf32>
      %c0_i32_7 = arith.constant 0 : i32
      %15 = vector.broadcast %c0_i32_7 : i32 to vector<1x512xi32>
      %16 = arith.cmpi sge, %8, %15 : vector<1x512xi32>
      %cst_8 = arith.constant 0.000000e+00 : f32
      %17 = vector.broadcast %cst_8 : f32 to vector<1x512xf32>
      %18 = arith.select %16, %14, %17 : vector<1x512xi1>, vector<1x512xf32>
      %19 = arith.mulf %6, %18 : vector<1x512xf32>
      %c0_9 = arith.constant 0 : index
      %c0_10 = arith.constant 0 : index
      %20 = arith.index_cast %4 : i32 to index
      %21 = vector.load %arg3[%c0_9, %c0_10, %20] : memref<8x8x1024xbf16, #tpu.memory_space<vmem>>, vector<1x8x512xbf16>
      %22 = vector.shape_cast %21 : vector<1x8x512xbf16> to vector<8x512xbf16>
      %23 = arith.extf %22 : vector<8x512xbf16> to vector<8x512xf32>
      %24 = vector.broadcast %19 : vector<1x512xf32> to vector<8x512xf32>
      %25 = arith.mulf %24, %23 : vector<8x512xf32>
      %26 = arith.addf %5, %25 : vector<8x512xf32>
      %cst_11 = arith.constant 1.000000e+00 : f32
      %27 = vector.broadcast %cst_11 : f32 to vector<1x512xf32>
      %28 = arith.subf %27, %18 : vector<1x512xf32>
      %29 = arith.mulf %6, %28 : vector<1x512xf32>
      %c1 = arith.constant 1 : index
      %30 = arith.index_cast %4 : i32 to index
      %31 = vector.load %arg1[%c1, %30] : memref<8x1024xi32, #tpu.memory_space<vmem>>, vector<1x512xi32>
      %c1_12 = arith.constant 1 : index
      %32 = arith.index_cast %4 : i32 to index
      %33 = vector.load %arg2[%c1_12, %32] : memref<8x1024xf32, #tpu.memory_space<vmem>>, vector<1x512xf32>
      %cst_13 = arith.constant 11.1111107 : f32
      %34 = vector.broadcast %cst_13 : f32 to vector<1x512xf32>
      %35 = arith.mulf %33, %34 : vector<1x512xf32>
      %cst_14 = arith.constant 1.000000e+00 : f32
      %36 = vector.broadcast %cst_14 : f32 to vector<1x512xf32>
      %37 = arith.subf %36, %35 : vector<1x512xf32>
      %c0_i32_15 = arith.constant 0 : i32
      %38 = vector.broadcast %c0_i32_15 : i32 to vector<1x512xi32>
      %39 = arith.cmpi sge, %31, %38 : vector<1x512xi32>
      %cst_16 = arith.constant 0.000000e+00 : f32
      %40 = vector.broadcast %cst_16 : f32 to vector<1x512xf32>
      %41 = arith.select %39, %37, %40 : vector<1x512xi1>, vector<1x512xf32>
      %42 = arith.mulf %29, %41 : vector<1x512xf32>
      %c1_17 = arith.constant 1 : index
      %c0_18 = arith.constant 0 : index
      %43 = arith.index_cast %4 : i32 to index
      %44 = vector.load %arg3[%c1_17, %c0_18, %43] : memref<8x8x1024xbf16, #tpu.memory_space<vmem>>, vector<1x8x512xbf16>
      %45 = vector.shape_cast %44 : vector<1x8x512xbf16> to vector<8x512xbf16>
      %46 = arith.extf %45 : vector<8x512xbf16> to vector<8x512xf32>
      %47 = vector.broadcast %42 : vector<1x512xf32> to vector<8x512xf32>
      %48 = arith.mulf %47, %46 : vector<8x512xf32>
      %49 = arith.addf %26, %48 : vector<8x512xf32>
      %cst_19 = arith.constant 1.000000e+00 : f32
      %50 = vector.broadcast %cst_19 : f32 to vector<1x512xf32>
      %51 = arith.subf %50, %41 : vector<1x512xf32>
      %52 = arith.mulf %29, %51 : vector<1x512xf32>
      %c2 = arith.constant 2 : index
      %53 = arith.index_cast %4 : i32 to index
      %54 = vector.load %arg1[%c2, %53] : memref<8x1024xi32, #tpu.memory_space<vmem>>, vector<1x512xi32>
      %c2_20 = arith.constant 2 : index
      %55 = arith.index_cast %4 : i32 to index
      %56 = vector.load %arg2[%c2_20, %55] : memref<8x1024xf32, #tpu.memory_space<vmem>>, vector<1x512xf32>
      %cst_21 = arith.constant 11.1111107 : f32
      %57 = vector.broadcast %cst_21 : f32 to vector<1x512xf32>
      %58 = arith.mulf %56, %57 : vector<1x512xf32>
      %cst_22 = arith.constant 1.000000e+00 : f32
      %59 = vector.broadcast %cst_22 : f32 to vector<1x512xf32>
      %60 = arith.subf %59, %58 : vector<1x512xf32>
      %c0_i32_23 = arith.constant 0 : i32
      %61 = vector.broadcast %c0_i32_23 : i32 to vector<1x512xi32>
      %62 = arith.cmpi sge, %54, %61 : vector<1x512xi32>
      %cst_24 = arith.constant 0.000000e+00 : f32
      %63 = vector.broadcast %cst_24 : f32 to vector<1x512xf32>
      %64 = arith.select %62, %60, %63 : vector<1x512xi1>, vector<1x512xf32>
      %65 = arith.mulf %52, %64 : vector<1x512xf32>
      %c2_25 = arith.constant 2 : index
      %c0_26 = arith.constant 0 : index
      %66 = arith.index_cast %4 : i32 to index
      %67 = vector.load %arg3[%c2_25, %c0_26, %66] : memref<8x8x1024xbf16, #tpu.memory_space<vmem>>, vector<1x8x512xbf16>
      %68 = vector.shape_cast %67 : vector<1x8x512xbf16> to vector<8x512xbf16>
      %69 = arith.extf %68 : vector<8x512xbf16> to vector<8x512xf32>
      %70 = vector.broadcast %65 : vector<1x512xf32> to vector<8x512xf32>
      %71 = arith.mulf %70, %69 : vector<8x512xf32>
      %72 = arith.addf %49, %71 : vector<8x512xf32>
      %cst_27 = arith.constant 1.000000e+00 : f32
      %73 = vector.broadcast %cst_27 : f32 to vector<1x512xf32>
      %74 = arith.subf %73, %64 : vector<1x512xf32>
      %75 = arith.mulf %52, %74 : vector<1x512xf32>
      %c3 = arith.constant 3 : index
      %76 = arith.index_cast %4 : i32 to index
      %77 = vector.load %arg1[%c3, %76] : memref<8x1024xi32, #tpu.memory_space<vmem>>, vector<1x512xi32>
      %c3_28 = arith.constant 3 : index
      %78 = arith.index_cast %4 : i32 to index
      %79 = vector.load %arg2[%c3_28, %78] : memref<8x1024xf32, #tpu.memory_space<vmem>>, vector<1x512xf32>
      %cst_29 = arith.constant 11.1111107 : f32
      %80 = vector.broadcast %cst_29 : f32 to vector<1x512xf32>
      %81 = arith.mulf %79, %80 : vector<1x512xf32>
      %cst_30 = arith.constant 1.000000e+00 : f32
      %82 = vector.broadcast %cst_30 : f32 to vector<1x512xf32>
      %83 = arith.subf %82, %81 : vector<1x512xf32>
      %c0_i32_31 = arith.constant 0 : i32
      %84 = vector.broadcast %c0_i32_31 : i32 to vector<1x512xi32>
      %85 = arith.cmpi sge, %77, %84 : vector<1x512xi32>
      %cst_32 = arith.constant 0.000000e+00 : f32
      %86 = vector.broadcast %cst_32 : f32 to vector<1x512xf32>
      %87 = arith.select %85, %83, %86 : vector<1x512xi1>, vector<1x512xf32>
      %88 = arith.mulf %75, %87 : vector<1x512xf32>
      %c3_33 = arith.constant 3 : index
      %c0_34 = arith.constant 0 : index
      %89 = arith.index_cast %4 : i32 to index
      %90 = vector.load %arg3[%c3_33, %c0_34, %89] : memref<8x8x1024xbf16, #tpu.memory_space<vmem>>, vector<1x8x512xbf16>
      %91 = vector.shape_cast %90 : vector<1x8x512xbf16> to vector<8x512xbf16>
      %92 = arith.extf %91 : vector<8x512xbf16> to vector<8x512xf32>
      %93 = vector.broadcast %88 : vector<1x512xf32> to vector<8x512xf32>
      %94 = arith.mulf %93, %92 : vector<8x512xf32>
      %95 = arith.addf %72, %94 : vector<8x512xf32>
      %cst_35 = arith.constant 1.000000e+00 : f32
      %96 = vector.broadcast %cst_35 : f32 to vector<1x512xf32>
      %97 = arith.subf %96, %87 : vector<1x512xf32>
      %98 = arith.mulf %75, %97 : vector<1x512xf32>
      %c4 = arith.constant 4 : index
      %99 = arith.index_cast %4 : i32 to index
      %100 = vector.load %arg1[%c4, %99] : memref<8x1024xi32, #tpu.memory_space<vmem>>, vector<1x512xi32>
      %c4_36 = arith.constant 4 : index
      %101 = arith.index_cast %4 : i32 to index
      %102 = vector.load %arg2[%c4_36, %101] : memref<8x1024xf32, #tpu.memory_space<vmem>>, vector<1x512xf32>
      %cst_37 = arith.constant 11.1111107 : f32
      %103 = vector.broadcast %cst_37 : f32 to vector<1x512xf32>
      %104 = arith.mulf %102, %103 : vector<1x512xf32>
      %cst_38 = arith.constant 1.000000e+00 : f32
      %105 = vector.broadcast %cst_38 : f32 to vector<1x512xf32>
      %106 = arith.subf %105, %104 : vector<1x512xf32>
      %c0_i32_39 = arith.constant 0 : i32
      %107 = vector.broadcast %c0_i32_39 : i32 to vector<1x512xi32>
      %108 = arith.cmpi sge, %100, %107 : vector<1x512xi32>
      %cst_40 = arith.constant 0.000000e+00 : f32
      %109 = vector.broadcast %cst_40 : f32 to vector<1x512xf32>
      %110 = arith.select %108, %106, %109 : vector<1x512xi1>, vector<1x512xf32>
      %111 = arith.mulf %98, %110 : vector<1x512xf32>
      %c4_41 = arith.constant 4 : index
      %c0_42 = arith.constant 0 : index
      %112 = arith.index_cast %4 : i32 to index
      %113 = vector.load %arg3[%c4_41, %c0_42, %112] : memref<8x8x1024xbf16, #tpu.memory_space<vmem>>, vector<1x8x512xbf16>
      %114 = vector.shape_cast %113 : vector<1x8x512xbf16> to vector<8x512xbf16>
      %115 = arith.extf %114 : vector<8x512xbf16> to vector<8x512xf32>
      %116 = vector.broadcast %111 : vector<1x512xf32> to vector<8x512xf32>
      %117 = arith.mulf %116, %115 : vector<8x512xf32>
      %118 = arith.addf %95, %117 : vector<8x512xf32>
      %cst_43 = arith.constant 1.000000e+00 : f32
      %119 = vector.broadcast %cst_43 : f32 to vector<1x512xf32>
      %120 = arith.subf %119, %110 : vector<1x512xf32>
      %121 = arith.mulf %98, %120 : vector<1x512xf32>
      %c5 = arith.constant 5 : index
      %122 = arith.index_cast %4 : i32 to index
      %123 = vector.load %arg1[%c5, %122] : memref<8x1024xi32, #tpu.memory_space<vmem>>, vector<1x512xi32>
      %c5_44 = arith.constant 5 : index
      %124 = arith.index_cast %4 : i32 to index
      %125 = vector.load %arg2[%c5_44, %124] : memref<8x1024xf32, #tpu.memory_space<vmem>>, vector<1x512xf32>
      %cst_45 = arith.constant 11.1111107 : f32
      %126 = vector.broadcast %cst_45 : f32 to vector<1x512xf32>
      %127 = arith.mulf %125, %126 : vector<1x512xf32>
      %cst_46 = arith.constant 1.000000e+00 : f32
      %128 = vector.broadcast %cst_46 : f32 to vector<1x512xf32>
      %129 = arith.subf %128, %127 : vector<1x512xf32>
      %c0_i32_47 = arith.constant 0 : i32
      %130 = vector.broadcast %c0_i32_47 : i32 to vector<1x512xi32>
      %131 = arith.cmpi sge, %123, %130 : vector<1x512xi32>
      %cst_48 = arith.constant 0.000000e+00 : f32
      %132 = vector.broadcast %cst_48 : f32 to vector<1x512xf32>
      %133 = arith.select %131, %129, %132 : vector<1x512xi1>, vector<1x512xf32>
      %134 = arith.mulf %121, %133 : vector<1x512xf32>
      %c5_49 = arith.constant 5 : index
      %c0_50 = arith.constant 0 : index
      %135 = arith.index_cast %4 : i32 to index
      %136 = vector.load %arg3[%c5_49, %c0_50, %135] : memref<8x8x1024xbf16, #tpu.memory_space<vmem>>, vector<1x8x512xbf16>
      %137 = vector.shape_cast %136 : vector<1x8x512xbf16> to vector<8x512xbf16>
      %138 = arith.extf %137 : vector<8x512xbf16> to vector<8x512xf32>
      %139 = vector.broadcast %134 : vector<1x512xf32> to vector<8x512xf32>
      %140 = arith.mulf %139, %138 : vector<8x512xf32>
      %141 = arith.addf %118, %140 : vector<8x512xf32>
      %cst_51 = arith.constant 1.000000e+00 : f32
      %142 = vector.broadcast %cst_51 : f32 to vector<1x512xf32>
      %143 = arith.subf %142, %133 : vector<1x512xf32>
      %144 = arith.mulf %121, %143 : vector<1x512xf32>
      %c6 = arith.constant 6 : index
      %145 = arith.index_cast %4 : i32 to index
      %146 = vector.load %arg1[%c6, %145] : memref<8x1024xi32, #tpu.memory_space<vmem>>, vector<1x512xi32>
      %c6_52 = arith.constant 6 : index
      %147 = arith.index_cast %4 : i32 to index
      %148 = vector.load %arg2[%c6_52, %147] : memref<8x1024xf32, #tpu.memory_space<vmem>>, vector<1x512xf32>
      %cst_53 = arith.constant 11.1111107 : f32
      %149 = vector.broadcast %cst_53 : f32 to vector<1x512xf32>
      %150 = arith.mulf %148, %149 : vector<1x512xf32>
      %cst_54 = arith.constant 1.000000e+00 : f32
      %151 = vector.broadcast %cst_54 : f32 to vector<1x512xf32>
      %152 = arith.subf %151, %150 : vector<1x512xf32>
      %c0_i32_55 = arith.constant 0 : i32
      %153 = vector.broadcast %c0_i32_55 : i32 to vector<1x512xi32>
      %154 = arith.cmpi sge, %146, %153 : vector<1x512xi32>
      %cst_56 = arith.constant 0.000000e+00 : f32
      %155 = vector.broadcast %cst_56 : f32 to vector<1x512xf32>
      %156 = arith.select %154, %152, %155 : vector<1x512xi1>, vector<1x512xf32>
      %157 = arith.mulf %144, %156 : vector<1x512xf32>
      %c6_57 = arith.constant 6 : index
      %c0_58 = arith.constant 0 : index
      %158 = arith.index_cast %4 : i32 to index
      %159 = vector.load %arg3[%c6_57, %c0_58, %158] : memref<8x8x1024xbf16, #tpu.memory_space<vmem>>, vector<1x8x512xbf16>
      %160 = vector.shape_cast %159 : vector<1x8x512xbf16> to vector<8x512xbf16>
      %161 = arith.extf %160 : vector<8x512xbf16> to vector<8x512xf32>
      %162 = vector.broadcast %157 : vector<1x512xf32> to vector<8x512xf32>
      %163 = arith.mulf %162, %161 : vector<8x512xf32>
      %164 = arith.addf %141, %163 : vector<8x512xf32>
      %cst_59 = arith.constant 1.000000e+00 : f32
      %165 = vector.broadcast %cst_59 : f32 to vector<1x512xf32>
      %166 = arith.subf %165, %156 : vector<1x512xf32>
      %167 = arith.mulf %144, %166 : vector<1x512xf32>
      %c7 = arith.constant 7 : index
      %168 = arith.index_cast %4 : i32 to index
      %169 = vector.load %arg1[%c7, %168] : memref<8x1024xi32, #tpu.memory_space<vmem>>, vector<1x512xi32>
      %c7_60 = arith.constant 7 : index
      %170 = arith.index_cast %4 : i32 to index
      %171 = vector.load %arg2[%c7_60, %170] : memref<8x1024xf32, #tpu.memory_space<vmem>>, vector<1x512xf32>
      %cst_61 = arith.constant 11.1111107 : f32
      %172 = vector.broadcast %cst_61 : f32 to vector<1x512xf32>
      %173 = arith.mulf %171, %172 : vector<1x512xf32>
      %cst_62 = arith.constant 1.000000e+00 : f32
      %174 = vector.broadcast %cst_62 : f32 to vector<1x512xf32>
      %175 = arith.subf %174, %173 : vector<1x512xf32>
      %c0_i32_63 = arith.constant 0 : i32
      %176 = vector.broadcast %c0_i32_63 : i32 to vector<1x512xi32>
      %177 = arith.cmpi sge, %169, %176 : vector<1x512xi32>
      %cst_64 = arith.constant 0.000000e+00 : f32
      %178 = vector.broadcast %cst_64 : f32 to vector<1x512xf32>
      %179 = arith.select %177, %175, %178 : vector<1x512xi1>, vector<1x512xf32>
      %180 = arith.mulf %167, %179 : vector<1x512xf32>
      %c7_65 = arith.constant 7 : index
      %c0_66 = arith.constant 0 : index
      %181 = arith.index_cast %4 : i32 to index
      %182 = vector.load %arg3[%c7_65, %c0_66, %181] : memref<8x8x1024xbf16, #tpu.memory_space<vmem>>, vector<1x8x512xbf16>
      %183 = vector.shape_cast %182 : vector<1x8x512xbf16> to vector<8x512xbf16>
      %184 = arith.extf %183 : vector<8x512xbf16> to vector<8x512xf32>
      %185 = vector.broadcast %180 : vector<1x512xf32> to vector<8x512xf32>
      %186 = arith.mulf %185, %184 : vector<8x512xf32>
      %187 = arith.addf %164, %186 : vector<8x512xf32>
      %c0_67 = arith.constant 0 : index
      %188 = arith.index_cast %4 : i32 to index
      %189 = vector.load %arg4[%c0_67, %188] : memref<8x1024xf32, #tpu.memory_space<vmem>>, vector<8x512xf32>
      tpu.vector_store %arg4[%c0_67, %188], %187 {strides = array<i32>} : memref<8x1024xf32, #tpu.memory_space<vmem>>, vector<8x512xf32>,
    }
    %c2_i32_0 = arith.constant 2 : i32
    return
  }
  func.func @transform_0(%arg0: i32) -> (i32, i32) {
    %c0_i32 = arith.constant 0 : i32
    %c0_i32_0 = arith.constant 0 : i32
    return %c0_i32, %arg0 : i32, i32
  }
  func.func @transform_1(%arg0: i32) -> (i32, i32) {
    %c0_i32 = arith.constant 0 : i32
    %c0_i32_0 = arith.constant 0 : i32
    return %c0_i32, %arg0 : i32, i32
  }
  func.func @transform_2(%arg0: i32) -> (i32, i32, i32) {
    %c0_i32 = arith.constant 0 : i32
    %c0_i32_0 = arith.constant 0 : i32
    %c0_i32_1 = arith.constant 0 : i32
    return %c0_i32, %c0_i32_0, %arg0 : i32, i32, i32
  }
  func.func @transform_3(%arg0: i32) -> (i32, i32) {
    %c0_i32 = arith.constant 0 : i32
    %c0_i32_0 = arith.constant 0 : i32
    return %c0_i32, %arg0 : i32, i32
  }
}

</mosaic_0001>

<llo_original>
// kernel: tpu_custom_call.1
$region0: #{tpu_custom_call.1}
  #allocation0 [shape = 'u32[]', space=smem, size = 0x4, offset = 0x4, fixed_abs, tag = 'smem constant byte address 0x4 - core index']
  #allocation1 [shape = 'u32[144,128]{1,0:T(1,128)}', space=vmem, size = 0x12000, scoped, tag = 'internal scratch']
  %s0 = inlined_call_operand.hbm [shape: s32[8,1024], index: 0, kind: input, shape index: {}]
  %s1 = inlined_call_operand.hbm [shape: f32[8,1024], index: 1, kind: input, shape index: {}]
  %s2 = inlined_call_operand.hbm [shape: bf16[8,8,1024], index: 2, kind: input, shape index: {}]
  %s3 = inlined_call_operand.hbm [shape: f32[8,1024], index: 3, kind: output, shape index: {}]
  %s4 = sld [smem:[#allocation0]]
  $region41: #{tpu_custom_call.1} parent=0
    _
  %s6 = ssub.s32 1, %s4
  %s7 = scalar_select 0, %s6, %s4
  $region1: #{tpu_custom_call.1} parent=0
    #allocation2 [shape = 'u8[32768]{0}', space=vmem, size = 0x8000, scoped, tag = 'input window, operand 0, single buffered']
    #allocation3 [shape = 's32[1]{0}', space=sflag, size = 0x4, scoped, tag = 'scoped memory for tpu_custom_call.1']
    #allocation4 [shape = 's32[1]{0}', space=sflag, size = 0x4, scoped, tag = 'scoped memory for tpu_custom_call.1']
    #allocation5 [shape = 'u8[32768]{0}', space=vmem, size = 0x8000, scoped, tag = 'input window, operand 1, single buffered']
    #allocation6 [shape = 's32[1]{0}', space=sflag, size = 0x4, scoped, tag = 'scoped memory for tpu_custom_call.1']
    #allocation7 [shape = 'u8[131072]{0}', space=vmem, size = 0x20000, scoped, tag = 'input window, operand 2, single buffered']
    #allocation8 [shape = 'u8[32768]{0}', space=vmem, size = 0x8000, scoped, tag = 'output window, operand 0, single buffered']
    %8 = vsyncpa [#allocation3], 0
    %9 = vsyncpa [#allocation6], 0
    %10 = vsyncpa [#allocation4], 0
    // Predicated region
    $region2: #{tpu_custom_call.1} parent=1 // pred_check
      _
    $region3: #{tpu_custom_call.1} parent=1 // pred_check_branch
      %12 = sbr.rel (0) target = $region5
    $region4: #{tpu_custom_call.1} parent=1 // pred_region
      %s14 = ssub.s32 1024, 1024
      %15 = vsyncadd [#allocation3], %s14
      %s17 = sshll.u32 [#allocation2], 4
      %s18 = int_to_ptr.vmem [resolvable:$true] %s17
      %20 = dma.hbm_to_vmem [thread:$0]  %s0, 1024, %s18, [#allocation3]
    $region5: #{tpu_custom_call.1} parent=1 // pred_fallthru
      _
    // Predicated region
    $region6: #{tpu_custom_call.1} parent=1 // pred_check
      _
    $region7: #{tpu_custom_call.1} parent=1 // pred_check_branch
      %22 = sbr.rel (0) target = $region9
    $region8: #{tpu_custom_call.1} parent=1 // pred_region
      %s24 = ssub.s32 1024, 1024
      %25 = vsyncadd [#allocation6], %s24
      %s27 = sshll.u32 [#allocation5], 4
      %s28 = int_to_ptr.vmem [resolvable:$true] %s27
      %30 = dma.hbm_to_vmem [thread:$0]  %s1, 1024, %s28, [#allocation6]
    $region9: #{tpu_custom_call.1} parent=1 // pred_fallthru
      _
    // Predicated region
    $region10: #{tpu_custom_call.1} parent=1 // pred_check
      _
    $region11: #{tpu_custom_call.1} parent=1 // pred_check_branch
      %32 = sbr.rel (0) target = $region13
    $region12: #{tpu_custom_call.1} parent=1 // pred_region
      %s34 = ssub.s32 4096, 4096
      %35 = vsyncadd [#allocation6], %s34
      %s36 = sshll.u32 [#allocation7], 4
      %s37 = int_to_ptr.vmem [resolvable:$true] %s36
      %42 = dma.hbm_to_vmem [thread:$0]  %s2, 4096, %s37, [#allocation6], 512, 512, 32
    $region13: #{tpu_custom_call.1} parent=1 // pred_fallthru
      _
    // Predicated region
    $region14: #{tpu_custom_call.1} parent=1 // pred_check
      _
    $region15: #{tpu_custom_call.1} parent=1 // pred_check_branch
      %44 = sbr.rel (0) target = $region17
    $region16: #{tpu_custom_call.1} parent=1 // pred_region
      %45 = dma.done [#allocation3], 1024
    $region17: #{tpu_custom_call.1} parent=1 // pred_fallthru
      _
    // Predicated region
    $region18: #{tpu_custom_call.1} parent=1 // pred_check
      _
    $region19: #{tpu_custom_call.1} parent=1 // pred_check_branch
      %47 = sbr.rel (0) target = $region21
    $region20: #{tpu_custom_call.1} parent=1 // pred_region
      %48 = dma.done [#allocation6], 1024
    $region21: #{tpu_custom_call.1} parent=1 // pred_fallthru
      _
    // Predicated region
    $region22: #{tpu_custom_call.1} parent=1 // pred_check
      _
    $region23: #{tpu_custom_call.1} parent=1 // pred_check_branch
      %50 = sbr.rel (0) target = $region25
    $region24: #{tpu_custom_call.1} parent=1 // pred_region
      %51 = dma.done [#allocation6], 4096
    $region25: #{tpu_custom_call.1} parent=1 // pred_fallthru
      _
    loop: start=0, step=1, limit=2
    $region26: #{tpu_custom_call.1} parent=1 // loop_pre_header
      _
    $region27: #{tpu_custom_call.1} parent=1 // loop_header
      %s53 = sphi 0, %s57
      %p54 = scmp.ge.s32.totalorder %s53, 2
    $region28: #{tpu_custom_call.1} parent=1 // loop_header_branch
      %56 = sbr.rel (%p54) target = $region32
    $region29: #{tpu_custom_call.1} parent=1 // loop_body
      %s58 = smul.u32 %s53, 512
      %s59 = sshra.s32 %s58, 7
      %s60 = sand.u32 %s58, 127
      %s61 = smul.addr %s59, 8
      %s62 = scalar_lea.vmem [#allocation2], %s61
      %v63 = vld [vmem:[%s62] ss:$8 sm:$0xf]
      %s64 = smul.addr %s59, 8
      %s65 = scalar_lea.vmem [#allocation5], %s64
      %v66 = vld [vmem:[%s65] ss:$8 sm:$0xf]
      %v67 = vmul.f32 %v66, 11.111111
      %v68 = vsub.f32 1.0, %v67
      %vm69 = vcmp.ge.s32.totalorder %v63, 0
      %v70 = vsel %vm69, %v68, 0.0
      %s71 = smul.addr %s59, 4
      %s72 = scalar_lea.vmem [#allocation7], %s71
      %v73 = vld [vmem:[%s72] sm:$0xff]
      %v74 = vld [vmem:[%s72 + $0x8] sm:$0xff]
      %v75 = vunpack.c.l.bf16 %v73
      %v76 = vunpack.c.h.bf16 %v73
      %v77 = vunpack.c.l.bf16 %v74
      %v78 = vunpack.c.h.bf16 %v74
      %v80 = vlaneseq
      %v81 = vshrl.u32 %v80, 7
      %v82 = vsub.s32 0, %v81
      %v83 = vrot.slane %v70, %v82
      %v84 = vlaneseq
      %v85 = vshrl.u32 %v84, 7
      %v86 = vsub.s32 1, %v85
      %v87 = vrot.slane %v70, %v86
      %v88 = vlaneseq
      %v89 = vshrl.u32 %v88, 7
      %v90 = vsub.s32 2, %v89
      %v91 = vrot.slane %v70, %v90
      %v92 = vlaneseq
      %v93 = vshrl.u32 %v92, 7
      %v94 = vsub.s32 3, %v93
      %v95 = vrot.slane %v70, %v94
      %v100 = vmul.f32 %v83, %v75
      %v101 = vmul.f32 %v87, %v76
      %v102 = vmul.f32 %v91, %v77
      %v103 = vmul.f32 %v95, %v78
      %v104 = vadd.f32 %v100, 0.0
      %v105 = vadd.f32 %v101, 0.0
      %v106 = vadd.f32 %v102, 0.0
      %v107 = vadd.f32 %v103, 0.0
      %v108 = vsub.f32 1.0, %v70
      %s109 = scalar_lea.vmem %s62, 1 [#allocation2]
      %v110 = vld [vmem:[%s109] ss:$8 sm:$0xf]
      %s111 = scalar_lea.vmem %s65, 1 [#allocation5]
      %v112 = vld [vmem:[%s111] ss:$8 sm:$0xf]
      %v113 = vmul.f32 %v112, 11.111111
      %v114 = vsub.f32 1.0, %v113
      %vm115 = vcmp.ge.s32.totalorder %v110, 0
      %v116 = vsel %vm115, %v114, 0.0
      %v117 = vmul.f32 %v108, %v116
      %s118 = sadd.s32 %s59, 8
      %s119 = smul.addr %s118, 4
      %s120 = scalar_lea.vmem [#allocation7], %s119
      %v121 = vld [vmem:[%s120] sm:$0xff]
      %v122 = vld [vmem:[%s120 + $0x8] sm:$0xff]
      %v123 = vunpack.c.l.bf16 %v121
      %v124 = vunpack.c.h.bf16 %v121
      %v125 = vunpack.c.l.bf16 %v122
      %v126 = vunpack.c.h.bf16 %v122
      %v128 = vlaneseq
      %v129 = vshrl.u32 %v128, 7
      %v130 = vsub.s32 0, %v129
      %v131 = vrot.slane %v117, %v130
      %v132 = vlaneseq
      %v133 = vshrl.u32 %v132, 7
      %v134 = vsub.s32 1, %v133
      %v135 = vrot.slane %v117, %v134
      %v136 = vlaneseq
      %v137 = vshrl.u32 %v136, 7
      %v138 = vsub.s32 2, %v137
      %v139 = vrot.slane %v117, %v138
      %v140 = vlaneseq
      %v141 = vshrl.u32 %v140, 7
      %v142 = vsub.s32 3, %v141
      %v143 = vrot.slane %v117, %v142
      %v148 = vmul.f32 %v131, %v123
      %v149 = vmul.f32 %v135, %v124
      %v150 = vmul.f32 %v139, %v125
      %v151 = vmul.f32 %v143, %v126
      %v152 = vadd.f32 %v104, %v148
      %v153 = vadd.f32 %v105, %v149
      %v154 = vadd.f32 %v106, %v150
      %v155 = vadd.f32 %v107, %v151
      %v156 = vsub.f32 1.0, %v116
      %v157 = vmul.f32 %v108, %v156
      %s158 = scalar_lea.vmem %s62, 2 [#allocation2]
      %v159 = vld [vmem:[%s158] ss:$8 sm:$0xf]
      %s160 = scalar_lea.vmem %s65, 2 [#allocation5]
      %v161 = vld [vmem:[%s160] ss:$8 sm:$0xf]
      %v162 = vmul.f32 %v161, 11.111111
      %v163 = vsub.f32 1.0, %v162
      %vm164 = vcmp.ge.s32.totalorder %v159, 0
      %v165 = vsel %vm164, %v163, 0.0
      %v166 = vmul.f32 %v157, %v165
      %s167 = sadd.s32 %s59, 16
      %s168 = smul.addr %s167, 4
      %s169 = scalar_lea.vmem [#allocation7], %s168
      %v170 = vld [vmem:[%s169] sm:$0xff]
      %v171 = vld [vmem:[%s169 + $0x8] sm:$0xff]
      %v172 = vunpack.c.l.bf16 %v170
      %v173 = vunpack.c.h.bf16 %v170
      %v174 = vunpack.c.l.bf16 %v171
      %v175 = vunpack.c.h.bf16 %v171
      %v177 = vlaneseq
      %v178 = vshrl.u32 %v177, 7
      %v179 = vsub.s32 0, %v178
      %v180 = vrot.slane %v166, %v179
      %v181 = vlaneseq
      %v182 = vshrl.u32 %v181, 7
      %v183 = vsub.s32 1, %v182
      %v184 = vrot.slane %v166, %v183
      %v185 = vlaneseq
      %v186 = vshrl.u32 %v185, 7
      %v187 = vsub.s32 2, %v186
      %v188 = vrot.slane %v166, %v187
      %v189 = vlaneseq
      %v190 = vshrl.u32 %v189, 7
      %v191 = vsub.s32 3, %v190
      %v192 = vrot.slane %v166, %v191
      %v197 = vmul.f32 %v180, %v172
      %v198 = vmul.f32 %v184, %v173
      %v199 = vmul.f32 %v188, %v174
      %v200 = vmul.f32 %v192, %v175
      %v201 = vadd.f32 %v152, %v197
      %v202 = vadd.f32 %v153, %v198
      %v203 = vadd.f32 %v154, %v199
      %v204 = vadd.f32 %v155, %v200
      %v205 = vsub.f32 1.0, %v165
      %v206 = vmul.f32 %v157, %v205
      %s207 = scalar_lea.vmem %s62, 3 [#allocation2]
      %v208 = vld [vmem:[%s207] ss:$8 sm:$0xf]
      %s209 = scalar_lea.vmem %s65, 3 [#allocation5]
      %v210 = vld [vmem:[%s209] ss:$8 sm:$0xf]
      %v211 = vmul.f32 %v210, 11.111111
      %v212 = vsub.f32 1.0, %v211
      %vm213 = vcmp.ge.s32.totalorder %v208, 0
      %v214 = vsel %vm213, %v212, 0.0
      %v215 = vmul.f32 %v206, %v214
      %s216 = sadd.s32 %s59, 24
      %s217 = smul.addr %s216, 4
      %s218 = scalar_lea.vmem [#allocation7], %s217
      %v219 = vld [vmem:[%s218] sm:$0xff]
      %v220 = vld [vmem:[%s218 + $0x8] sm:$0xff]
      %v221 = vunpack.c.l.bf16 %v219
      %v222 = vunpack.c.h.bf16 %v219
      %v223 = vunpack.c.l.bf16 %v220
      %v224 = vunpack.c.h.bf16 %v220
      %v226 = vlaneseq
      %v227 = vshrl.u32 %v226, 7
      %v228 = vsub.s32 0, %v227
      %v229 = vrot.slane %v215, %v228
      %v230 = vlaneseq
      %v231 = vshrl.u32 %v230, 7
      %v232 = vsub.s32 1, %v231
      %v233 = vrot.slane %v215, %v232
      %v234 = vlaneseq
      %v235 = vshrl.u32 %v234, 7
      %v236 = vsub.s32 2, %v235
      %v237 = vrot.slane %v215, %v236
      %v238 = vlaneseq
      %v239 = vshrl.u32 %v238, 7
      %v240 = vsub.s32 3, %v239
      %v241 = vrot.slane %v215, %v240
      %v246 = vmul.f32 %v229, %v221
      %v247 = vmul.f32 %v233, %v222
      %v248 = vmul.f32 %v237, %v223
      %v249 = vmul.f32 %v241, %v224
      %v250 = vadd.f32 %v201, %v246
      %v251 = vadd.f32 %v202, %v247
      %v252 = vadd.f32 %v203, %v248
      %v253 = vadd.f32 %v204, %v249
      %v254 = vsub.f32 1.0, %v214
      %v255 = vmul.f32 %v206, %v254
      %s256 = scalar_lea.vmem %s62, 4 [#allocation2]
      %v257 = vld [vmem:[%s256] ss:$8 sm:$0xf]
      %s258 = scalar_lea.vmem %s65, 4 [#allocation5]
      %v259 = vld [vmem:[%s258] ss:$8 sm:$0xf]
      %v260 = vmul.f32 %v259, 11.111111
      %v261 = vsub.f32 1.0, %v260
      %vm262 = vcmp.ge.s32.totalorder %v257, 0
      %v263 = vsel %vm262, %v261, 0.0
      %v264 = vmul.f32 %v255, %v263
      %s265 = sadd.s32 %s59, 32
      %s266 = smul.addr %s265, 4
      %s267 = scalar_lea.vmem [#allocation7], %s266
      %v268 = vld [vmem:[%s267] sm:$0xff]
      %v269 = vld [vmem:[%s267 + $0x8] sm:$0xff]
      %v270 = vunpack.c.l.bf16 %v268
      %v271 = vunpack.c.h.bf16 %v268
      %v272 = vunpack.c.l.bf16 %v269
      %v273 = vunpack.c.h.bf16 %v269
      %v275 = vlaneseq
      %v276 = vshrl.u32 %v275, 7
      %v277 = vsub.s32 0, %v276
      %v278 = vrot.slane %v264, %v277
      %v279 = vlaneseq
      %v280 = vshrl.u32 %v279, 7
      %v281 = vsub.s32 1, %v280
      %v282 = vrot.slane %v264, %v281
      %v283 = vlaneseq
      %v284 = vshrl.u32 %v283, 7
      %v285 = vsub.s32 2, %v284
      %v286 = vrot.slane %v264, %v285
      %v287 = vlaneseq
      %v288 = vshrl.u32 %v287, 7
      %v289 = vsub.s32 3, %v288
      %v290 = vrot.slane %v264, %v289
      %v295 = vmul.f32 %v278, %v270
      %v296 = vmul.f32 %v282, %v271
      %v297 = vmul.f32 %v286, %v272
      %v298 = vmul.f32 %v290, %v273
      %v299 = vadd.f32 %v250, %v295
      %v300 = vadd.f32 %v251, %v296
      %v301 = vadd.f32 %v252, %v297
      %v302 = vadd.f32 %v253, %v298
      %v303 = vsub.f32 1.0, %v263
      %v304 = vmul.f32 %v255, %v303
      %s305 = scalar_lea.vmem %s62, 5 [#allocation2]
      %v306 = vld [vmem:[%s305] ss:$8 sm:$0xf]
      %s307 = scalar_lea.vmem %s65, 5 [#allocation5]
      %v308 = vld [vmem:[%s307] ss:$8 sm:$0xf]
      %v309 = vmul.f32 %v308, 11.111111
      %v310 = vsub.f32 1.0, %v309
      %vm311 = vcmp.ge.s32.totalorder %v306, 0
      %v312 = vsel %vm311, %v310, 0.0
      %v313 = vmul.f32 %v304, %v312
      %s314 = sadd.s32 %s59, 40
      %s315 = smul.addr %s314, 4
      %s316 = scalar_lea.vmem [#allocation7], %s315
      %v317 = vld [vmem:[%s316] sm:$0xff]
      %v318 = vld [vmem:[%s316 + $0x8] sm:$0xff]
      %v319 = vunpack.c.l.bf16 %v317
      %v320 = vunpack.c.h.bf16 %v317
      %v321 = vunpack.c.l.bf16 %v318
      %v322 = vunpack.c.h.bf16 %v318
      %v324 = vlaneseq
      %v325 = vshrl.u32 %v324, 7
      %v326 = vsub.s32 0, %v325
      %v327 = vrot.slane %v313, %v326
      %v328 = vlaneseq
      %v329 = vshrl.u32 %v328, 7
      %v330 = vsub.s32 1, %v329
      %v331 = vrot.slane %v313, %v330
      %v332 = vlaneseq
      %v333 = vshrl.u32 %v332, 7
      %v334 = vsub.s32 2, %v333
      %v335 = vrot.slane %v313, %v334
      %v336 = vlaneseq
      %v337 = vshrl.u32 %v336, 7
      %v338 = vsub.s32 3, %v337
      %v339 = vrot.slane %v313, %v338
      %v344 = vmul.f32 %v327, %v319
      %v345 = vmul.f32 %v331, %v320
      %v346 = vmul.f32 %v335, %v321
      %v347 = vmul.f32 %v339, %v322
      %v348 = vadd.f32 %v299, %v344
      %v349 = vadd.f32 %v300, %v345
      %v350 = vadd.f32 %v301, %v346
      %v351 = vadd.f32 %v302, %v347
      %v352 = vsub.f32 1.0, %v312
      %v353 = vmul.f32 %v304, %v352
      %s354 = scalar_lea.vmem %s62, 6 [#allocation2]
      %v355 = vld [vmem:[%s354] ss:$8 sm:$0xf]
      %s356 = scalar_lea.vmem %s65, 6 [#allocation5]
      %v357 = vld [vmem:[%s356] ss:$8 sm:$0xf]
      %v358 = vmul.f32 %v357, 11.111111
      %v359 = vsub.f32 1.0, %v358
      %vm360 = vcmp.ge.s32.totalorder %v355, 0
      %v361 = vsel %vm360, %v359, 0.0
      %v362 = vmul.f32 %v353, %v361
      %s363 = sadd.s32 %s59, 48
      %s364 = smul.addr %s363, 4
      %s365 = scalar_lea.vmem [#allocation7], %s364
      %v366 = vld [vmem:[%s365] sm:$0xff]
      %v367 = vld [vmem:[%s365 + $0x8] sm:$0xff]
      %v368 = vunpack.c.l.bf16 %v366
      %v369 = vunpack.c.h.bf16 %v366
      %v370 = vunpack.c.l.bf16 %v367
      %v371 = vunpack.c.h.bf16 %v367
      %v373 = vlaneseq
      %v374 = vshrl.u32 %v373, 7
      %v375 = vsub.s32 0, %v374
      %v376 = vrot.slane %v362, %v375
      %v377 = vlaneseq
      %v378 = vshrl.u32 %v377, 7
      %v379 = vsub.s32 1, %v378
      %v380 = vrot.slane %v362, %v379
      %v381 = vlaneseq
      %v382 = vshrl.u32 %v381, 7
      %v383 = vsub.s32 2, %v382
      %v384 = vrot.slane %v362, %v383
      %v385 = vlaneseq
      %v386 = vshrl.u32 %v385, 7
      %v387 = vsub.s32 3, %v386
      %v388 = vrot.slane %v362, %v387
      %v393 = vmul.f32 %v376, %v368
      %v394 = vmul.f32 %v380, %v369
      %v395 = vmul.f32 %v384, %v370
      %v396 = vmul.f32 %v388, %v371
      %v397 = vadd.f32 %v348, %v393
      %v398 = vadd.f32 %v349, %v394
      %v399 = vadd.f32 %v350, %v395
      %v400 = vadd.f32 %v351, %v396
      %v401 = vsub.f32 1.0, %v361
      %v402 = vmul.f32 %v353, %v401
      %s403 = scalar_lea.vmem %s62, 7 [#allocation2]
      %v404 = vld [vmem:[%s403] ss:$8 sm:$0xf]
      %s405 = scalar_lea.vmem %s65, 7 [#allocation5]
      %v406 = vld [vmem:[%s405] ss:$8 sm:$0xf]
      %v407 = vmul.f32 %v406, 11.111111
      %v408 = vsub.f32 1.0, %v407
      %vm409 = vcmp.ge.s32.totalorder %v404, 0
      %v410 = vsel %vm409, %v408, 0.0
      %v411 = vmul.f32 %v402, %v410
      %s412 = sadd.s32 %s59, 56
      %s413 = smul.addr %s412, 4
      %s414 = scalar_lea.vmem [#allocation7], %s413
      %v415 = vld [vmem:[%s414] sm:$0xff]
      %v416 = vld [vmem:[%s414 + $0x8] sm:$0xff]
      %v417 = vunpack.c.l.bf16 %v415
      %v418 = vunpack.c.h.bf16 %v415
      %v419 = vunpack.c.l.bf16 %v416
      %v420 = vunpack.c.h.bf16 %v416
      %v422 = vlaneseq
      %v423 = vshrl.u32 %v422, 7
      %v424 = vsub.s32 0, %v423
      %v425 = vrot.slane %v411, %v424
      %v426 = vlaneseq
      %v427 = vshrl.u32 %v426, 7
      %v428 = vsub.s32 1, %v427
      %v429 = vrot.slane %v411, %v428
      %v430 = vlaneseq
      %v431 = vshrl.u32 %v430, 7
      %v432 = vsub.s32 2, %v431
      %v433 = vrot.slane %v411, %v432
      %v434 = vlaneseq
      %v435 = vshrl.u32 %v434, 7
      %v436 = vsub.s32 3, %v435
      %v437 = vrot.slane %v411, %v436
      %v442 = vmul.f32 %v425, %v417
      %v443 = vmul.f32 %v429, %v418
      %v444 = vmul.f32 %v433, %v419
      %v445 = vmul.f32 %v437, %v420
      %v446 = vadd.f32 %v397, %v442
      %v447 = vadd.f32 %v398, %v443
      %v448 = vadd.f32 %v399, %v444
      %v449 = vadd.f32 %v400, %v445
      %s450 = smul.addr %s59, 8
      %s451 = scalar_lea.vmem [#allocation8], %s450
      %452 = vst [vmem:[%s451] sm:$0xff] %v446
      %453 = vst [vmem:[%s451 + $0x8] sm:$0xff] %v447
      %454 = vst [vmem:[%s451 + $0x10] sm:$0xff] %v448
      %455 = vst [vmem:[%s451 + $0x18] sm:$0xff] %v449
    $region30: #{tpu_custom_call.1} parent=1 // loop_footer
      %s57 = sadd.s32 1, %s53
    $region31: #{tpu_custom_call.1} parent=1 // loop_footer_branch
      %52 = sbr.rel target = $region27
    $region32: #{tpu_custom_call.1} parent=1 // loop_exit
      _
    // Predicated region
    $region33: #{tpu_custom_call.1} parent=1 // pred_check
      _
    $region34: #{tpu_custom_call.1} parent=1 // pred_check_branch
      %457 = sbr.rel (0) target = $region36
    $region35: #{tpu_custom_call.1} parent=1 // pred_region
      %s459 = ssub.s32 1024, 1024
      %460 = vsyncadd [#allocation4], %s459
      %s462 = sshll.u32 [#allocation8], 4
      %s463 = int_to_ptr.vmem [resolvable:$true] %s462
      %465 = dma.vmem_to_hbm [thread:$0]  %s463, 1024, %s3, [#allocation4]
    $region36: #{tpu_custom_call.1} parent=1 // pred_fallthru
      _
    // Predicated region
    $region37: #{tpu_custom_call.1} parent=1 // pred_check
      _
    $region38: #{tpu_custom_call.1} parent=1 // pred_check_branch
      %467 = sbr.rel (0) target = $region40
    $region39: #{tpu_custom_call.1} parent=1 // pred_region
      %468 = dma.done [#allocation4], 1024
    $region40: #{tpu_custom_call.1} parent=1 // pred_fallthru
      _
    %469 = vsyncpa [#allocation3], 1
    %470 = vsyncpa [#allocation6], 1
    %471 = vsyncpa [#allocation4], 1

</llo_original>
